<compile_context>
chip_gen: v5e
topology: v5e:2x2
jax: 0.10.0
libtpu: 0.0.40
codegen_flags: <defaults>
</compile_context>

<pallas_src>
import functools
import math

import jax
import jax.numpy as jnp
from jax.experimental import pallas as pl
from jax.experimental.pallas import tpu as pltpu

_LANE = 128
_ROW_ALIGN = 16            # second-minor alignment safe for bf16 (16) and f32 (8)
_MAX_TILE_N = 1024         # bigger row tiles: fewer grid steps, MXU better fed
_MIN_SPLIT_ROWS = 256      # only force >=2 row tiles (v7x megacore) when worthwhile
_VMEM_BUDGET = 48 * 1024 * 1024   # conservative vs v7x's 64 MiB per TensorCore


def _round_up(x, m):
    return ((x + m - 1) // m) * m


def _fused_mlp_kernel(*refs, num_layers, sigmoid_output):
    """Fused MLP: chained bf16 matmuls with f32 accumulation; the intermediate
    activation never leaves VMEM (kept bf16 between layers).

    refs = (x_ref, w0_ref, b0_ref, ..., w_{L-1}_ref, b_{L-1}_ref, o_ref)
    x/weights are bf16, biases are f32 (1, dout).
    """
    x_ref = refs[0]
    o_ref = refs[-1]
    wb = refs[1:-1]

    h = x_ref[...]                                   # bf16 (tile_n, in_dim)
    for i in range(num_layers):
        w = wb[2 * i][...]                           # bf16 (din, dout), resident
        b = wb[2 * i + 1][...]                       # f32  (1, dout), resident
        acc = jnp.dot(h, w, preferred_element_type=jnp.float32) + b
        if i < num_layers - 1:
            # ReLU in f32, then back to bf16: halves the live activation
            # footprint and the MXU consumes bf16 next layer anyway.
            h = jnp.maximum(acc, 0.0).astype(jnp.bfloat16)
        else:
            h = acc                                  # keep f32 for sigmoid/store
    if sigmoid_output:
        h = jax.nn.sigmoid(h)
    o_ref[...] = h.astype(o_ref.dtype)


def init_mlp_params(key, input_dim, hidden_dim, output_dim, num_layers,
                    dtype=jnp.float32):
    """Deterministic synthetic params. Shapes mirror nn.Linear (stored transposed)."""
    h = [hidden_dim] * (num_layers - 1)
    in_dims = [input_dim] + h
    out_dims = h + [output_dim]
    weights, biases = [], []
    for i, (n_in, n_out) in enumerate(zip(in_dims, out_dims)):
        kw, kb, key = jax.random.split(jax.random.fold_in(key, i), 3)
        bound = 1.0 / jnp.sqrt(jnp.asarray(n_in, dtype=jnp.float32))
        w = jax.random.uniform(kw, (n_in, n_out), dtype, -bound, bound)
        b = jax.random.uniform(kb, (n_out,), dtype, -bound, bound)
        weights.append(w)
        biases.append(b)
    return weights, biases


def prepare_mlp_params(weights, biases):
    """One-time preprocessing (hoisted out of the forward).

    Weights -> bf16, biases -> f32 (1, dout).  Only the FINAL layer's output
    dim is zero-padded to a multiple of 128 (lane-dense output stores); hidden /
    contraction dims stay unpadded (full-extent blocks need no alignment and
    padding K only wastes MXU pushes + DMA).  Zero padding keeps math exact.
    """
    num_layers = len(weights)
    out_dim = weights[-1].shape[1]
    out_dim_p = _round_up(out_dim, _LANE)
    layers = []
    for i, (w, b) in enumerate(zip(weights, biases)):
        din, dout = w.shape
        dout_p = out_dim_p if i == num_layers - 1 else dout
        if dout_p != dout:
            w_p = jnp.zeros((din, dout_p), jnp.bfloat16).at[:, :dout].set(
                w.astype(jnp.bfloat16))
            b_p = jnp.zeros((1, dout_p), jnp.float32).at[0, :dout].set(
                b.astype(jnp.float32))
        else:
            w_p = w.astype(jnp.bfloat16)
            b_p = b.astype(jnp.float32).reshape(1, dout)
        layers.append((w_p, b_p))
    return layers, out_dim, out_dim_p


def _vmem_footprint(tile_n, dims, out_dim_p, wb_bytes, out_itemsize):
    """Rough VMEM bytes: double-buffered x/out tiles + resident (double-
    buffered) weights/biases + live intermediates at the widest layer."""
    x_tile = tile_n * dims[0] * 2                     # bf16 input tile
    out_tile = tile_n * out_dim_p * out_itemsize
    widest = max(max(dims), out_dim_p)
    live = tile_n * widest * (4 + 2)                  # f32 acc + bf16 h
    return 2 * (x_tile + out_tile) + 2 * wb_bytes + live


def mlp_forward(x, params, sigmoid_output=False, max_tile_n=_MAX_TILE_N):
    """Matches MLP.forward: ReLU between layers, optional sigmoid on output."""
    layers, out_dim, out_dim_p = params
    num_layers = len(layers)
    orig_shape = x.shape
    in_dim = orig_shape[-1]
    n = math.prod(orig_shape[:-1])
    out_dtype = x.dtype
    out_itemsize = jnp.dtype(out_dtype).itemsize

    dims = [in_dim] + [w.shape[1] for w, _ in layers]       # per-layer widths
    wb_bytes = sum(w.size * w.dtype.itemsize + b.size * b.dtype.itemsize
                   for w, b in layers)

    # ---- row tiling: tile_n ~evenly divides the row count; for large n force
    # an even number of >=2 grid steps so both v7x TensorCores get work. ------
    n8 = _round_up(max(n, 1), _ROW_ALIGN)
    num_tiles = pl.cdiv(n8, max_tile_n)
    if n8 >= _MIN_SPLIT_ROWS:
        num_tiles = max(num_tiles, 2)
    if num_tiles > 1 and num_tiles % 2 == 1:
        num_tiles += 1
    tile_n = _round_up(pl.cdiv(n8, num_tiles), _ROW_ALIGN)

    # ---- VMEM budget (v7x: 64 MiB/TC): shrink tile_n until it fits. ---------
    # TODO(synk): if resident weights alone blow the budget (huge MLPs), add a
    # K/N-tiled fallback (grid over hidden/out, f32 accumulator, Buffered(1)).
    while tile_n > _ROW_ALIGN and _vmem_footprint(
            tile_n, dims, out_dim_p, wb_bytes, out_itemsize) > _VMEM_BUDGET:
        tile_n = _round_up(tile_n // 2, _ROW_ALIGN)

    grid_n = pl.cdiv(n8, tile_n)
    n_p = grid_n * tile_n

    # ---- input: bf16 cast fused into the (only-if-needed) row-pad copy. -----
    x2 = x.reshape(n, in_dim)
    if n_p == n:
        x_p = x2.astype(jnp.bfloat16)
    else:
        x_p = jnp.zeros((n_p, in_dim), jnp.bfloat16).at[:n].set(
            x2.astype(jnp.bfloat16))

    args = [x_p]
    in_specs = [pl.BlockSpec((tile_n, in_dim), lambda i: (i, 0))]
    for w, b in layers:
        args += [w, b]
        in_specs += [
            pl.BlockSpec(w.shape, lambda i: (0, 0)),    # resident weight
            pl.BlockSpec(b.shape, lambda i: (0, 0)),    # resident bias
        ]

    # Cost estimate from TRUE (unpadded) dims; bytes = actual DMA traffic.
    true_dims = list(dims)
    true_dims[-1] = out_dim
    flops = 2 * n * sum(true_dims[i] * true_dims[i + 1]
                        for i in range(num_layers))
    transcendentals = n * out_dim if sigmoid_output else 0
    bytes_accessed = int(x_p.size * x_p.dtype.itemsize + wb_bytes
                         + n_p * out_dim_p * out_itemsize)

    footprint = _vmem_footprint(tile_n, dims, out_dim_p, wb_bytes, out_itemsize)
    vmem_limit = int(min(max(2 * footprint, 32 * 1024 * 1024),
                         60 * 1024 * 1024))

    out_p = pl.pallas_call(
        functools.partial(_fused_mlp_kernel, num_layers=num_layers,
                          sigmoid_output=sigmoid_output),
        out_shape=jax.ShapeDtypeStruct((n_p, out_dim_p), out_dtype),
        grid=(grid_n,),
        in_specs=in_specs,
        out_specs=pl.BlockSpec((tile_n, out_dim_p), lambda i: (i, 0)),
        compiler_params=pltpu.CompilerParams(
            dimension_semantics=("parallel",),
            vmem_limit_bytes=vmem_limit),
        cost_estimate=pl.CostEstimate(flops=flops,
                                      transcendentals=transcendentals,
                                      bytes_accessed=bytes_accessed),
    )(*args)

    out = out_p
    if n_p != n or out_dim_p != out_dim:
        out = out_p[:n, :out_dim]
    return out.reshape(*orig_shape[:-1], out_dim)


def mlp_reference(x, weights, biases, sigmoid_output=False):
    """Pure-JAX (f32) reference of the PyTorch forward."""
    num_layers = len(weights)
    h = x
    for i, (w, b) in enumerate(zip(weights, biases)):
        h = h @ w + b
        if i < num_layers - 1:
            h = jnp.maximum(h, 0.0)
    if sigmoid_output:
        h = jax.nn.sigmoid(h)
    return h


if __name__ == "__main__":
    key = jax.random.PRNGKey(0)
    k_x, k_p = jax.random.split(key)

    # Small shapes consistent with the module: tokens (batch=2, seq=8), 32->32->16
    input_dim, hidden_dim, output_dim, num_layers = 32, 32, 16, 3
    sigmoid_output = True

    x = jax.random.normal(k_x, (2, 8, input_dim), dtype=jnp.float32)
    weights, biases = init_mlp_params(k_p, input_dim, hidden_dim, output_dim,
                                      num_layers)

    # One-time param prep (hoisted out of the forward path).
    params = prepare_mlp_params(weights, biases)

    out = mlp_forward(x, params, sigmoid_output=sigmoid_output)
    out = jax.block_until_ready(out)

    ref = mlp_reference(x, weights, biases, sigmoid_output=sigmoid_output)
    assert out.shape == (2, 8, output_dim), out.shape
    # bf16 matmul inputs / inter-layer activations with f32 accumulation.
    assert jnp.allclose(out, ref, atol=2e-2, rtol=2e-2), (
        "mismatch vs reference: max abs diff "
        f"{float(jnp.max(jnp.abs(out - ref)))}")

    print("KERNEL_OK")
</pallas_src>

<mosaic_0001>
module attributes {stable_mosaic.version = 11 : i64} {
  func.func @_fused_mlp_kernel(%arg0: i32, %arg1: memref<16x32xbf16, #tpu.memory_space<vmem>>, %arg2: memref<32x32xbf16, #tpu.memory_space<vmem>>, %arg3: memref<1x32xf32, #tpu.memory_space<vmem>>, %arg4: memref<32x32xbf16, #tpu.memory_space<vmem>>, %arg5: memref<1x32xf32, #tpu.memory_space<vmem>>, %arg6: memref<32x128xbf16, #tpu.memory_space<vmem>>, %arg7: memref<1x128xf32, #tpu.memory_space<vmem>>, %arg8: memref<16x128xf32, #tpu.memory_space<vmem>>) attributes {dimension_semantics = [#tpu.dimension_semantics<parallel>], iteration_bounds = array<i64: 1>, scalar_prefetch = 0 : i64, scratch_operands = 0 : i64, tpu.core_type = #tpu.core_type<tc>, window_params = [{transform_indices = @transform_0, window_bounds = array<i64: 16, 32>}, {pipeline_mode = #tpu.pipeline_mode<synchronous>, transform_indices = @transform_1, window_bounds = array<i64: 32, 32>}, {pipeline_mode = #tpu.pipeline_mode<synchronous>, transform_indices = @transform_2, window_bounds = array<i64: 1, 32>}, {pipeline_mode = #tpu.pipeline_mode<synchronous>, transform_indices = @transform_3, window_bounds = array<i64: 32, 32>}, {pipeline_mode = #tpu.pipeline_mode<synchronous>, transform_indices = @transform_4, window_bounds = array<i64: 1, 32>}, {pipeline_mode = #tpu.pipeline_mode<synchronous>, transform_indices = @transform_5, window_bounds = array<i64: 32, 128>}, {pipeline_mode = #tpu.pipeline_mode<synchronous>, transform_indices = @transform_6, window_bounds = array<i64: 1, 128>}, {transform_indices = @transform_7, window_bounds = array<i64: 16, 128>}]} {
    %c0 = arith.constant 0 : index
    %c0_0 = arith.constant 0 : index
    %0 = vector.load %arg1[%c0, %c0_0] : memref<16x32xbf16, #tpu.memory_space<vmem>>, vector<16x32xbf16>
    %c0_1 = arith.constant 0 : index
    %c0_2 = arith.constant 0 : index
    %1 = vector.load %arg2[%c0_1, %c0_2] : memref<32x32xbf16, #tpu.memory_space<vmem>>, vector<32x32xbf16>
    %c0_3 = arith.constant 0 : index
    %c0_4 = arith.constant 0 : index
    %2 = vector.load %arg3[%c0_3, %c0_4] : memref<1x32xf32, #tpu.memory_space<vmem>>, vector<1x32xf32>
    %cst = arith.constant dense<0.000000e+00> : vector<16x32xf32>
    %3 = tpu.matmul %0, %1, %cst {dimension_numbers = #tpu.dot_dimension_numbers<[1], [0], [0], [1], [0, 0, 1, 1], [], []>} : vector<16x32xbf16>, vector<32x32xbf16>, vector<16x32xf32> -> vector<16x32xf32>
    %4 = vector.broadcast %2 : vector<1x32xf32> to vector<16x32xf32>
    %5 = arith.addf %3, %4 : vector<16x32xf32>
    %cst_5 = arith.constant 0.000000e+00 : f32
    %6 = vector.broadcast %cst_5 : f32 to vector<16x32xf32>
    %7 = arith.maximumf %5, %6 : vector<16x32xf32>
    %8 = arith.truncf %7 : vector<16x32xf32> to vector<16x32xbf16>
    %c0_6 = arith.constant 0 : index
    %c0_7 = arith.constant 0 : index
    %9 = vector.load %arg4[%c0_6, %c0_7] : memref<32x32xbf16, #tpu.memory_space<vmem>>, vector<32x32xbf16>
    %c0_8 = arith.constant 0 : index
    %c0_9 = arith.constant 0 : index
    %10 = vector.load %arg5[%c0_8, %c0_9] : memref<1x32xf32, #tpu.memory_space<vmem>>, vector<1x32xf32>
    %cst_10 = arith.constant dense<0.000000e+00> : vector<16x32xf32>
    %11 = tpu.matmul %8, %9, %cst_10 {dimension_numbers = #tpu.dot_dimension_numbers<[1], [0], [0], [1], [0, 0, 1, 1], [], []>} : vector<16x32xbf16>, vector<32x32xbf16>, vector<16x32xf32> -> vector<16x32xf32>
    %12 = vector.broadcast %10 : vector<1x32xf32> to vector<16x32xf32>
    %13 = arith.addf %11, %12 : vector<16x32xf32>
    %cst_11 = arith.constant 0.000000e+00 : f32
    %14 = vector.broadcast %cst_11 : f32 to vector<16x32xf32>
    %15 = arith.maximumf %13, %14 : vector<16x32xf32>
    %16 = arith.truncf %15 : vector<16x32xf32> to vector<16x32xbf16>
    %c0_12 = arith.constant 0 : index
    %c0_13 = arith.constant 0 : index
    %17 = vector.load %arg6[%c0_12, %c0_13] : memref<32x128xbf16, #tpu.memory_space<vmem>>, vector<32x128xbf16>
    %c0_14 = arith.constant 0 : index
    %c0_15 = arith.constant 0 : index
    %18 = vector.load %arg7[%c0_14, %c0_15] : memref<1x128xf32, #tpu.memory_space<vmem>>, vector<1x128xf32>
    %cst_16 = arith.constant dense<0.000000e+00> : vector<16x128xf32>
    %19 = tpu.matmul %16, %17, %cst_16 {dimension_numbers = #tpu.dot_dimension_numbers<[1], [0], [0], [1], [0, 0, 1, 1], [], []>} : vector<16x32xbf16>, vector<32x128xbf16>, vector<16x128xf32> -> vector<16x128xf32>
    %20 = vector.broadcast %18 : vector<1x128xf32> to vector<16x128xf32>
    %21 = arith.addf %19, %20 : vector<16x128xf32>
    %22 = arith.negf %21 : vector<16x128xf32>
    %23 = math.exp %22 : vector<16x128xf32>
    %cst_17 = arith.constant 1.000000e+00 : f32
    %24 = vector.broadcast %cst_17 : f32 to vector<16x128xf32>
    %25 = arith.addf %24, %23 : vector<16x128xf32>
    %26 = arith.divf %24, %25 : vector<16x128xf32>
    %c0_18 = arith.constant 0 : index
    %c0_19 = arith.constant 0 : index
    %27 = vector.load %arg8[%c0_18, %c0_19] : memref<16x128xf32, #tpu.memory_space<vmem>>, vector<16x128xf32>
    tpu.vector_store %arg8[%c0_18, %c0_19], %26 {strides = array<i32>} : memref<16x128xf32, #tpu.memory_space<vmem>>, vector<16x128xf32>,
    return
  }
  func.func @transform_0(%arg0: i32) -> (i32, i32) {
    %c0_i32 = arith.constant 0 : i32
    %c0_i32_0 = arith.constant 0 : i32
    return %arg0, %c0_i32 : i32, i32
  }
  func.func @transform_1(%arg0: i32) -> (i32, i32) {
    %c0_i32 = arith.constant 0 : i32
    %c0_i32_0 = arith.constant 0 : i32
    %c0_i32_1 = arith.constant 0 : i32
    return %c0_i32, %c0_i32_0 : i32, i32
  }
  func.func @transform_2(%arg0: i32) -> (i32, i32) {
    %c0_i32 = arith.constant 0 : i32
    %c0_i32_0 = arith.constant 0 : i32
    %c0_i32_1 = arith.constant 0 : i32
    return %c0_i32, %c0_i32_0 : i32, i32
  }
  func.func @transform_3(%arg0: i32) -> (i32, i32) {
    %c0_i32 = arith.constant 0 : i32
    %c0_i32_0 = arith.constant 0 : i32
    %c0_i32_1 = arith.constant 0 : i32
    return %c0_i32, %c0_i32_0 : i32, i32
  }
  func.func @transform_4(%arg0: i32) -> (i32, i32) {
    %c0_i32 = arith.constant 0 : i32
    %c0_i32_0 = arith.constant 0 : i32
    %c0_i32_1 = arith.constant 0 : i32
    return %c0_i32, %c0_i32_0 : i32, i32
  }
  func.func @transform_5(%arg0: i32) -> (i32, i32) {
    %c0_i32 = arith.constant 0 : i32
    %c0_i32_0 = arith.constant 0 : i32
    %c0_i32_1 = arith.constant 0 : i32
    return %c0_i32, %c0_i32_0 : i32, i32
  }
  func.func @transform_6(%arg0: i32) -> (i32, i32) {
    %c0_i32 = arith.constant 0 : i32
    %c0_i32_0 = arith.constant 0 : i32
    %c0_i32_1 = arith.constant 0 : i32
    return %c0_i32, %c0_i32_0 : i32, i32
  }
  func.func @transform_7(%arg0: i32) -> (i32, i32) {
    %c0_i32 = arith.constant 0 : i32
    %c0_i32_0 = arith.constant 0 : i32
    return %arg0, %c0_i32 : i32, i32
  }
}

</mosaic_0001>

<llo_original>
// kernel: tpu_custom_call.1
$region0: #{tpu_custom_call.1}
  #allocation0 [shape = 'u32[]', space=smem, size = 0x4, offset = 0x4, fixed_abs, tag = 'smem constant byte address 0x4 - core index']
  #allocation1 [shape = 'u32[72,128]{1,0:T(1,128)}', space=vmem, size = 0x9000, scoped, tag = 'internal scratch']
  %s0 = inlined_call_operand.hbm [shape: bf16[16,32], index: 0, kind: input, shape index: {}]
  %s1 = inlined_call_operand.hbm [shape: bf16[32,32], index: 1, kind: input, shape index: {}]
  %s2 = inlined_call_operand.vmem [shape: f32[1,32], index: 2, kind: input, shape index: {}]
  %s3 = inlined_call_operand.hbm [shape: bf16[32,32], index: 3, kind: input, shape index: {}]
  %s4 = inlined_call_operand.vmem [shape: f32[1,32], index: 4, kind: input, shape index: {}]
  %s5 = inlined_call_operand.hbm [shape: bf16[32,128], index: 5, kind: input, shape index: {}]
  %s6 = inlined_call_operand.vmem [shape: f32[1,128], index: 6, kind: input, shape index: {}]
  %s7 = inlined_call_operand.hbm [shape: f32[16,128], index: 7, kind: output, shape index: {}]
  %s8 = sld [smem:[#allocation0]]
  $region54: #{tpu_custom_call.1} parent=0
    _
  %s10 = ssub.s32 1, %s8
  %s11 = scalar_select 0, %s10, %s8
  $region1: #{tpu_custom_call.1} parent=0
    #allocation2 [shape = 'u8[4096]{0}', space=vmem, size = 0x1000, scoped, tag = 'input window, operand 0, single buffered']
    #allocation3 [shape = 's32[1]{0}', space=sflag, size = 0x4, scoped, tag = 'scoped memory for tpu_custom_call.1']
    #allocation4 [shape = 's32[1]{0}', space=sflag, size = 0x4, scoped, tag = 'scoped memory for tpu_custom_call.1']
    #allocation5 [shape = 'u8[8192]{0}', space=vmem, size = 0x2000, scoped, tag = 'input window, operand 1, single buffered']
    #allocation6 [shape = 's32[1]{0}', space=sflag, size = 0x4, scoped, tag = 'scoped memory for tpu_custom_call.1']
    #allocation7 [shape = 'u8[8192]{0}', space=vmem, size = 0x2000, scoped, tag = 'input window, operand 3, single buffered']
    #allocation8 [shape = 'u8[8192]{0}', space=vmem, size = 0x2000, scoped, tag = 'input window, operand 5, single buffered']
    #allocation9 [shape = 's32[1]{0}', space=sflag, size = 0x4, scoped, tag = 'scoped memory for tpu_custom_call.1']
    #allocation10 [shape = 'u8[8192]{0}', space=vmem, size = 0x2000, scoped, tag = 'output window, operand 0, single buffered']
    %12 = vsyncpa [#allocation3], 0
    %13 = vsyncpa [#allocation6], 0
    %14 = vsyncpa [#allocation9], 0
    %15 = vsyncpa [#allocation4], 0
    // Predicated region
    $region2: #{tpu_custom_call.1} parent=1 // pred_check
      _
    $region3: #{tpu_custom_call.1} parent=1 // pred_check_branch
      %17 = sbr.rel (0) target = $region5
    $region4: #{tpu_custom_call.1} parent=1 // pred_region
      %19 = vsyncadd [#allocation3], 0
      %s20 = sshll.u32 %s0, 4
      %s21 = int_to_ptr.hbm [resolvable:$true] %s20
      %s22 = sshll.u32 [#allocation2], 4
      %s23 = int_to_ptr.vmem [resolvable:$true] %s22
      %28 = dma.hbm_to_vmem [thread:$0]  %s21, 128, %s23, [#allocation3], 64, 64, 4
    $region5: #{tpu_custom_call.1} parent=1 // pred_fallthru
      _
    // Predicated region
    $region6: #{tpu_custom_call.1} parent=1 // pred_check
      _
    $region7: #{tpu_custom_call.1} parent=1 // pred_check_branch
      %30 = sbr.rel (0) target = $region9
    $region8: #{tpu_custom_call.1} parent=1 // pred_region
      %32 = vsyncadd [#allocation6], 0
      %s33 = sshll.u32 %s1, 4
      %s34 = int_to_ptr.hbm [resolvable:$true] %s33
      %s35 = sshll.u32 [#allocation5], 4
      %s36 = int_to_ptr.vmem [resolvable:$true] %s35
      %41 = dma.hbm_to_vmem [thread:$0]  %s34, 256, %s36, [#allocation6], 64, 64, 4
    $region9: #{tpu_custom_call.1} parent=1 // pred_fallthru
      _
    // Predicated region
    $region10: #{tpu_custom_call.1} parent=1 // pred_check
      _
    $region11: #{tpu_custom_call.1} parent=1 // pred_check_branch
      %43 = sbr.rel (0) target = $region13
    $region12: #{tpu_custom_call.1} parent=1 // pred_region
      _
    $region13: #{tpu_custom_call.1} parent=1 // pred_fallthru
      _
    // Predicated region
    $region14: #{tpu_custom_call.1} parent=1 // pred_check
      _
    $region15: #{tpu_custom_call.1} parent=1 // pred_check_branch
      %45 = sbr.rel (0) target = $region17
    $region16: #{tpu_custom_call.1} parent=1 // pred_region
      %47 = vsyncadd [#allocation6], 0
      %s48 = sshll.u32 %s3, 4
      %s49 = int_to_ptr.hbm [resolvable:$true] %s48
      %s50 = sshll.u32 [#allocation7], 4
      %s51 = int_to_ptr.vmem [resolvable:$true] %s50
      %56 = dma.hbm_to_vmem [thread:$0]  %s49, 256, %s51, [#allocation6], 64, 64, 4
    $region17: #{tpu_custom_call.1} parent=1 // pred_fallthru
      _
    // Predicated region
    $region18: #{tpu_custom_call.1} parent=1 // pred_check
      _
    $region19: #{tpu_custom_call.1} parent=1 // pred_check_branch
      %58 = sbr.rel (0) target = $region21
    $region20: #{tpu_custom_call.1} parent=1 // pred_region
      _
    $region21: #{tpu_custom_call.1} parent=1 // pred_fallthru
      _
    // Predicated region
    $region22: #{tpu_custom_call.1} parent=1 // pred_check
      _
    $region23: #{tpu_custom_call.1} parent=1 // pred_check_branch
      %60 = sbr.rel (0) target = $region25
    $region24: #{tpu_custom_call.1} parent=1 // pred_region
      %62 = vsyncadd [#allocation9], 0
      %s63 = sshll.u32 %s5, 4
      %s64 = int_to_ptr.hbm [resolvable:$true] %s63
      %s65 = sshll.u32 [#allocation8], 4
      %s66 = int_to_ptr.vmem [resolvable:$true] %s65
      %71 = dma.hbm_to_vmem [thread:$0]  %s64, 256, %s66, [#allocation9], 64, 64, 4
    $region25: #{tpu_custom_call.1} parent=1 // pred_fallthru
      _
    // Predicated region
    $region26: #{tpu_custom_call.1} parent=1 // pred_check
      _
    $region27: #{tpu_custom_call.1} parent=1 // pred_check_branch
      %73 = sbr.rel (0) target = $region29
    $region28: #{tpu_custom_call.1} parent=1 // pred_region
      _
    $region29: #{tpu_custom_call.1} parent=1 // pred_fallthru
      _
    // Predicated region
    $region30: #{tpu_custom_call.1} parent=1 // pred_check
      _
    $region31: #{tpu_custom_call.1} parent=1 // pred_check_branch
      %75 = sbr.rel (0) target = $region33
    $region32: #{tpu_custom_call.1} parent=1 // pred_region
      %77 = dma.done [#allocation3], 128
    $region33: #{tpu_custom_call.1} parent=1 // pred_fallthru
      _
    // Predicated region
    $region34: #{tpu_custom_call.1} parent=1 // pred_check
      _
    $region35: #{tpu_custom_call.1} parent=1 // pred_check_branch
      %79 = sbr.rel (0) target = $region37
    $region36: #{tpu_custom_call.1} parent=1 // pred_region
      %81 = dma.done [#allocation6], 256
    $region37: #{tpu_custom_call.1} parent=1 // pred_fallthru
      _
    // Predicated region
    $region38: #{tpu_custom_call.1} parent=1 // pred_check
      _
    $region39: #{tpu_custom_call.1} parent=1 // pred_check_branch
      %83 = sbr.rel (0) target = $region41
    $region40: #{tpu_custom_call.1} parent=1 // pred_region
      %85 = dma.done [#allocation6], 256
    $region41: #{tpu_custom_call.1} parent=1 // pred_fallthru
      _
    // Predicated region
    $region42: #{tpu_custom_call.1} parent=1 // pred_check
      _
    $region43: #{tpu_custom_call.1} parent=1 // pred_check_branch
      %87 = sbr.rel (0) target = $region45
    $region44: #{tpu_custom_call.1} parent=1 // pred_region
      %89 = dma.done [#allocation9], 256
    $region45: #{tpu_custom_call.1} parent=1 // pred_fallthru
      _
    %v91 = vld [vmem:[#allocation2] sm:$0xf]
    %v92 = vld [vmem:[#allocation2 + $0x4] sm:$0xf]
    %v93 = vld [vmem:[#allocation5] sm:$0xf]
    %v94 = vld [vmem:[#allocation5 + $0x4] sm:$0xf]
    %v95 = vld [vmem:[#allocation5 + $0x8] sm:$0xf]
    %v96 = vld [vmem:[#allocation5 + $0xc] sm:$0xf]
    %v97 = vld [vmem:[%s2] sm:$0x1]
    %v99 = vperm.slane %v97, 0
    %v103 = vunpack.c.l.b16 %v91
    %v104 = vunpack.c.l.b16 %v92
    %v105 = vpack.c.b16 %v104, %v103
    %v110 = vunpack.c.l.b16 %v93
    %v111 = vunpack.c.l.b16 %v94
    %v112 = vunpack.c.l.b16 %v95
    %v113 = vunpack.c.l.b16 %v96
    %v114 = vpack.c.b16 %v111, %v110
    %v115 = vpack.c.b16 %v113, %v112
    %vm118 = vcmask 261120
    %v120 = vsel %vm118, %v105, 0
    %122 = vmatpush.bf16.msra.mxu0 0
    %123 = vmatpush.bf16.msra.mxu0 0
    %124 = vmatpush.bf16.msra.mxu0 0
    %125 = vmatpush.bf16.msra.mxu0 0
    %126 = vmatpush.bf16.msra.mxu0 0
    %127 = vmatpush.bf16.msra.mxu0 0
    %128 = vmatpush.bf16.msra.mxu0 %v115
    %129 = vmatpush.bf16.msra.mxu0 %v114
    %130 = vmatmul.bf16.gmra.mxu0 %v120
    %v131 = vpop.f32.mrf.mxu0
    %v132 = vadd.f32 %v99, %v131
    %v133 = vpop.f32.mrf.mxu0
    %v134 = vadd.f32 %v99, %v133
    %135 = vdwg.mxu0
    %v136 = vmax.f32 %v132, 0.0
    %v137 = vmax.f32 %v134, 0.0
    %v138 = vpack.c.bf16 %v137, %v136
    %v139 = vld [vmem:[#allocation7] sm:$0xf]
    %v140 = vld [vmem:[#allocation7 + $0x4] sm:$0xf]
    %v141 = vld [vmem:[#allocation7 + $0x8] sm:$0xf]
    %v142 = vld [vmem:[#allocation7 + $0xc] sm:$0xf]
    %v143 = vld [vmem:[%s4] sm:$0x1]
    %v145 = vperm.slane %v143, 0
    %v151 = vunpack.c.l.b16 %v139
    %v152 = vunpack.c.l.b16 %v140
    %v153 = vunpack.c.l.b16 %v141
    %v154 = vunpack.c.l.b16 %v142
    %v155 = vpack.c.b16 %v152, %v151
    %v156 = vpack.c.b16 %v154, %v153
    %v160 = vsel %vm118, %v138, 0
    %162 = vmatpush.bf16.msra.mxu0 0
    %163 = vmatpush.bf16.msra.mxu0 0
    %164 = vmatpush.bf16.msra.mxu0 0
    %165 = vmatpush.bf16.msra.mxu0 0
    %166 = vmatpush.bf16.msra.mxu0 0
    %167 = vmatpush.bf16.msra.mxu0 0
    %168 = vmatpush.bf16.msra.mxu0 %v156
    %169 = vmatpush.bf16.msra.mxu0 %v155
    %170 = vmatmul.bf16.gmra.mxu0 %v160
    %v171 = vpop.f32.mrf.mxu0
    %v172 = vadd.f32 %v145, %v171
    %v173 = vpop.f32.mrf.mxu0
    %v174 = vadd.f32 %v145, %v173
    %175 = vdwg.mxu0
    %v176 = vmax.f32 %v172, 0.0
    %v177 = vmax.f32 %v174, 0.0
    %v178 = vpack.c.bf16 %v177, %v176
    %v179 = vld [vmem:[#allocation8] sm:$0xf]
    %v180 = vld [vmem:[#allocation8 + $0x4] sm:$0xf]
    %v181 = vld [vmem:[#allocation8 + $0x8] sm:$0xf]
    %v182 = vld [vmem:[#allocation8 + $0xc] sm:$0xf]
    %v183 = vld [vmem:[%s6] sm:$0x1]
    %v185 = vperm.slane %v183, 0
    %v191 = vunpack.c.l.b16 %v179
    %v192 = vunpack.c.l.b16 %v180
    %v193 = vunpack.c.l.b16 %v181
    %v194 = vunpack.c.l.b16 %v182
    %v195 = vpack.c.b16 %v192, %v191
    %v196 = vpack.c.b16 %v194, %v193
    %v200 = vsel %vm118, %v178, 0
    %202 = vmatpush.bf16.msra.mxu0 0
    %203 = vmatpush.bf16.msra.mxu0 0
    %204 = vmatpush.bf16.msra.mxu0 0
    %205 = vmatpush.bf16.msra.mxu0 0
    %206 = vmatpush.bf16.msra.mxu0 0
    %207 = vmatpush.bf16.msra.mxu0 0
    %208 = vmatpush.bf16.msra.mxu0 %v196
    %209 = vmatpush.bf16.msra.mxu0 %v195
    %210 = vmatmul.bf16.gmra.mxu0 %v200
    %v211 = vpop.f32.mrf.mxu0
    %v212 = vadd.f32 %v185, %v211
    %v213 = vpop.f32.mrf.mxu0
    %v214 = vadd.f32 %v185, %v213
    %215 = vdwg.mxu0
    %v216 = vxor.u32 %v212, 2147483648
    %v217 = vxor.u32 %v214, 2147483648
    %v218 = vmul.f32 %v216, 1.442695
    %v219 = vpow.pop %v218
    %v220 = vmul.f32 %v217, 1.442695
    %v221 = vpow.pop %v220
    %v222 = vadd.f32 %v219, 1.0
    %v223 = vadd.f32 %v221, 1.0
    %v224 = vrcp.pop %v222
    %v225 = vmul.f32 %v222, %v224
    %v226 = vsub.f32 1.0, %v225
    %v227 = vmul.f32 %v224, %v226
    %v228 = vadd.f32 %v224, %v227
    %vm229 = vweird.f32 %v222
    %vm230 = vweird.f32 %v224
    %vm231 = vmor %vm229, %vm230
    %v232 = vsel %vm231, %v224, %v228
    %v233 = vand.u32 2147483647, %v222
    %vm234 = vcmp.eq.f32.partialorder %v233, 8.507059e+37
    %v235 = vand.u32 %v222, 2147483648
    %v236 = vor.u32 1.1754944e-38, %v235
    %v237 = vsel %vm234, %v236, %v232
    %v238 = vmul.f32 1.0, %v237
    %v239 = vrcp.pop %v223
    %v240 = vmul.f32 %v223, %v239
    %v241 = vsub.f32 1.0, %v240
    %v242 = vmul.f32 %v239, %v241
    %v243 = vadd.f32 %v239, %v242
    %vm244 = vweird.f32 %v223
    %vm245 = vweird.f32 %v239
    %vm246 = vmor %vm244, %vm245
    %v247 = vsel %vm246, %v239, %v243
    %v248 = vand.u32 2147483647, %v223
    %vm249 = vcmp.eq.f32.partialorder %v248, 8.507059e+37
    %v250 = vand.u32 %v223, 2147483648
    %v251 = vor.u32 1.1754944e-38, %v250
    %v252 = vsel %vm249, %v251, %v247
    %v253 = vmul.f32 1.0, %v252
    %254 = vst [vmem:[#allocation10] sm:$0xff] %v238
    %255 = vst [vmem:[#allocation10 + $0x8] sm:$0xff] %v253
    // Predicated region
    $region46: #{tpu_custom_call.1} parent=1 // pred_check
      _
    $region47: #{tpu_custom_call.1} parent=1 // pred_check_branch
      %257 = sbr.rel (0) target = $region49
    $region48: #{tpu_custom_call.1} parent=1 // pred_region
      %259 = vsyncadd [#allocation4], 0
      %s260 = sshll.u32 [#allocation10], 4
      %s261 = int_to_ptr.vmem [resolvable:$true] %s260
      %s262 = sshll.u32 %s7, 4
      %s263 = int_to_ptr.hbm [resolvable:$true] %s262
      %268 = dma.vmem_to_hbm [thread:$0]  %s261, 256, %s263, [#allocation4], 128, 128, 8
    $region49: #{tpu_custom_call.1} parent=1 // pred_fallthru
      _
    // Predicated region
    $region50: #{tpu_custom_call.1} parent=1 // pred_check
      _
    $region51: #{tpu_custom_call.1} parent=1 // pred_check_branch
      %270 = sbr.rel (0) target = $region53
    $region52: #{tpu_custom_call.1} parent=1 // pred_region
      %272 = dma.done [#allocation4], 256
    $region53: #{tpu_custom_call.1} parent=1 // pred_fallthru
      _
    %273 = vsyncpa [#allocation3], 1
    %274 = vsyncpa [#allocation6], 1
    %275 = vsyncpa [#allocation9], 1
    %276 = vsyncpa [#allocation4], 1

</llo_original>
